<compile_context>
chip_gen: v5e
topology: v5e:2x2
jax: 0.10.0
libtpu: 0.0.40
codegen_flags: <defaults>
</compile_context>

<pallas_src>
import jax
import jax.numpy as jnp
from jax.experimental import pallas as pl
from jax.experimental.pallas import tpu as pltpu


# ---------------------------------------------------------------------------
# Kernels
# ---------------------------------------------------------------------------

def _ffn_kernel_resident(x_ref, w1_ref, b1_ref, w2_ref, b2_ref, o_ref):
    """Full FFN for one row tile; both weight matrices are VMEM-resident.

    x_ref : (tr, d_model)      input dtype (cast to weight dtype in-kernel)
    w1_ref: (d_model, d_ffn)   W1^T
    b1_ref: (1, d_ffn)         f32
    w2_ref: (d_ffn, d_model)   W2^T
    b2_ref: (1, d_model)       f32
    o_ref : (tr, d_model)
    """
    x = x_ref[...].astype(w1_ref.dtype)
    h = jnp.dot(x, w1_ref[...], preferred_element_type=jnp.float32)
    h = jnp.maximum(h + b1_ref[...], 0.0)
    # TODO(synk): training-mode dropout; eval mode -> identity.
    y = jnp.dot(h.astype(w2_ref.dtype), w2_ref[...],
                preferred_element_type=jnp.float32)
    o_ref[...] = (y + b2_ref[...]).astype(o_ref.dtype)


def _ffn_kernel_tiled(x_ref, w1_ref, b1_ref, w2_ref, b2_ref, o_ref, acc_ref):
    """One (row-tile, ffn-slice) step of the FFN; partial-sum over the ffn axis.

    ReLU is elementwise per ffn column, so summing per-slice contributions of
    relu(x @ W1^T + b1) @ W2^T over ffn slices is exact.
    """
    k = pl.program_id(1)

    @pl.when(k == 0)
    def _init():
        acc_ref[...] = jnp.zeros_like(acc_ref)

    x = x_ref[...].astype(w1_ref.dtype)
    h = jnp.dot(x, w1_ref[...], preferred_element_type=jnp.float32)
    h = jnp.maximum(h + b1_ref[...], 0.0)
    # TODO(synk): training-mode dropout; eval mode -> identity.
    acc_ref[...] += jnp.dot(h.astype(w2_ref.dtype), w2_ref[...],
                            preferred_element_type=jnp.float32)

    @pl.when(k == pl.num_programs(1) - 1)
    def _finalize():
        o_ref[...] = (acc_ref[...] + b2_ref[...]).astype(o_ref.dtype)


# ---------------------------------------------------------------------------
# Parameter preparation (one-time, outside the hot path)
# ---------------------------------------------------------------------------

def _round_up(x, m):
    return ((x + m - 1) // m) * m


def prepare_ffn_params(w1, b1, w2, b2, compute_dtype=jnp.bfloat16):
    """Transpose / cast / pad PyTorch nn.Linear params into kernel layout.

    w1: (d_ffn, d_model), b1: (d_ffn,), w2: (d_model, d_ffn), b2: (d_model,)
    Returns W1^T (d_model, d_ffn_p), b1 (1, d_ffn_p) f32, W2^T (d_ffn_p, d_model),
    b2 (1, d_model) f32, with d_ffn zero-padded to a multiple of 128 so the ffn
    axis can always be tiled in 128-lane slices (padded columns contribute 0).
    """
    w_dtype = compute_dtype if compute_dtype is not None else w1.dtype
    w1_t = jnp.asarray(jnp.transpose(w1), dtype=w_dtype)    # (d_model, d_ffn)
    w2_t = jnp.asarray(jnp.transpose(w2), dtype=w_dtype)    # (d_ffn, d_model)
    b1_2d = jnp.asarray(b1, dtype=jnp.float32).reshape(1, -1)
    b2_2d = jnp.asarray(b2, dtype=jnp.float32).reshape(1, -1)

    d_ffn = w1_t.shape[1]
    d_ffn_p = _round_up(d_ffn, 128)
    if d_ffn_p != d_ffn:
        pad = d_ffn_p - d_ffn
        w1_t = jnp.pad(w1_t, ((0, 0), (0, pad)))
        b1_2d = jnp.pad(b1_2d, ((0, 0), (0, pad)))
        w2_t = jnp.pad(w2_t, ((0, pad), (0, 0)))
    return w1_t, b1_2d, w2_t, b2_2d


# ---------------------------------------------------------------------------
# Tile selection helpers
# ---------------------------------------------------------------------------

def _vmem_budget_bytes():
    """~75% of physical VMEM, capped at 100 MiB (=> ~48 MiB on v7x, ~96-100 MiB
    on v5e/v6e). Conservative 64-MiB assumption if the query is unavailable."""
    cap = None
    try:
        info = pltpu.get_tpu_info()
        cap = getattr(info, "vmem_capacity_bytes", None)
    except Exception:
        cap = None
    if not cap:
        cap = 64 << 20
    return int(min(cap * 3 // 4, 100 << 20))


def _vmem_estimate(tr, tf, d_model, x_isz, out_isz, w_isz, resident):
    """Rough VMEM footprint: double-buffered tiles + in-kernel intermediates."""
    db = 2
    est = (db * tr * d_model * x_isz          # x row tile
           + db * tr * d_model * out_isz      # output row tile
           + db * d_model * tf * w_isz        # W1^T slice
           + db * tf * d_model * w_isz        # W2^T slice
           + db * (tf + d_model) * 4          # f32 biases
           + tr * d_model * w_isz             # in-kernel cast copy of x
           + tr * tf * (4 + w_isz)            # h (f32) + its cast for 2nd dot
           + tr * d_model * 4)                # y / partial-dot f32 result
    if not resident:
        est += tr * d_model * 4               # f32 accumulator scratch
    return int(est * 1.15)                    # headroom for internal scratch


def _row_tile_candidates(rows, tr0, sublane):
    """Descending row-tile candidates: sublane multiples, or the full extent."""
    cands = []
    t = max(tr0, sublane)
    while True:
        c = rows if t >= rows else max((t // sublane) * sublane, sublane)
        if c not in cands:
            cands.append(c)
        if t <= sublane:
            break
        t //= 2
    return cands


def _ffn_tile_candidates(d_ffn, tf0):
    """Divisors of d_ffn that are multiples of 128, largest first, <= tf0."""
    cands = []
    if d_ffn % 128 == 0:
        nb = d_ffn // 128
        for m in range(min(max(tf0 // 128, 1), nb), 0, -1):
            if nb % m == 0:
                cands.append(m * 128)
    if not cands:
        cands = [d_ffn]                       # small / un-padded d_ffn
    return cands


# ---------------------------------------------------------------------------
# Wrapper
# ---------------------------------------------------------------------------

def positionwise_ffn(x, w1_t, b1_2d, w2_t, b2_2d, *,
                     tile_rows=None, tile_ffn=None):
    """x: (B, S, d_model); params already in kernel layout (prepare_ffn_params)."""
    B, S, d_model = x.shape
    d_ffn = w1_t.shape[1]
    assert w1_t.shape == (d_model, d_ffn)
    assert w2_t.shape == (d_ffn, d_model)
    assert b1_2d.shape == (1, d_ffn) and b2_2d.shape == (1, d_model)

    out_dtype = x.dtype
    x_isz = jnp.dtype(x.dtype).itemsize
    out_isz = jnp.dtype(out_dtype).itemsize
    w_isz = jnp.dtype(w1_t.dtype).itemsize
    sublane = 16 if (w_isz < 4 or x_isz < 4) else 8

    rows = B * S
    x2d = x.reshape(rows, d_model)            # no copy, no cast (cast in-kernel)

    budget = _vmem_budget_bytes()
    if tile_rows is None:
        # 128-MiB parts (v5e/v6e) take big row tiles; 512 keeps v7x (64 MiB)
        # comfortably compute-bound at bf16 when weights must be re-streamed.
        tile_rows = 1024 if budget > (64 << 20) else 512
    if tile_ffn is None:
        tile_ffn = 2048 if budget > (64 << 20) else 1024

    def fits(tr_, tf_, resident_):
        return _vmem_estimate(tr_, tf_, d_model, x_isz, out_isz, w_isz,
                              resident_) <= budget

    row_cands = _row_tile_candidates(rows, tile_rows, sublane)

    # 1) Prefer VMEM-resident weights (no re-streaming, no accumulator RMW).
    tr = tf = None
    resident = False
    for cand in row_cands:
        if fits(cand, d_ffn, True):
            tr, tf, resident = cand, d_ffn, True
            break
    # 2) Otherwise tile the ffn axis (2-D grid, f32 accumulator over k).
    if tr is None:
        for tf_cand in _ffn_tile_candidates(d_ffn, tile_ffn):
            for cand in row_cands:
                if fits(cand, tf_cand, False):
                    tr, tf = cand, tf_cand
                    break
            if tr is not None:
                break
    # 3) Last resort: smallest tiles (may exceed the soft budget).
    if tr is None:
        tr = row_cands[-1]
        tf = 128 if d_ffn % 128 == 0 else d_ffn
        resident = (tf == d_ffn)

    # v7x megacore: make sure a single-row-tile resident launch splits into two
    # row tiles so both TensorCores get work (harmless extra step on 1-TC chips,
    # since resident weights are not re-DMA'd across row tiles).
    if resident and tr == rows and rows >= 2 * sublane:
        half = _round_up((rows + 1) // 2, sublane)
        if half < rows:
            tr = half

    grid_rows = pl.cdiv(rows, tr)

    flops = 4 * rows * d_model * d_ffn
    w_passes = 1 if resident else grid_rows
    cost = pl.CostEstimate(
        flops=flops, transcendentals=0,
        bytes_accessed=int(rows * d_model * (x_isz + out_isz)
                           + w_passes * 2 * d_model * d_ffn * w_isz
                           + (d_ffn + d_model) * 4))

    if resident:
        grid = (grid_rows,)
        in_specs = [
            pl.BlockSpec((tr, d_model), lambda i: (i, 0)),        # x row tile
            pl.BlockSpec((d_model, d_ffn), lambda i: (0, 0)),     # W1^T (resident)
            pl.BlockSpec((1, d_ffn), lambda i: (0, 0)),           # b1
            pl.BlockSpec((d_ffn, d_model), lambda i: (0, 0)),     # W2^T (resident)
            pl.BlockSpec((1, d_model), lambda i: (0, 0)),         # b2
        ]
        out_specs = pl.BlockSpec((tr, d_model), lambda i: (i, 0))
        scratch_shapes = []
        kernel = _ffn_kernel_resident
        dim_sem = ("parallel",)
    else:
        grid = (grid_rows, d_ffn // tf)
        in_specs = [
            pl.BlockSpec((tr, d_model), lambda i, k: (i, 0)),     # x row tile
            pl.BlockSpec((d_model, tf), lambda i, k: (0, k)),     # W1^T slice
            pl.BlockSpec((1, tf), lambda i, k: (0, k)),           # b1 slice
            pl.BlockSpec((tf, d_model), lambda i, k: (k, 0)),     # W2^T slice
            pl.BlockSpec((1, d_model), lambda i, k: (0, 0)),      # b2
        ]
        out_specs = pl.BlockSpec((tr, d_model), lambda i, k: (i, 0))
        scratch_shapes = [pltpu.VMEM((tr, d_model), jnp.float32)]
        kernel = _ffn_kernel_tiled
        dim_sem = ("parallel", "arbitrary")

    out2d = pl.pallas_call(
        kernel,
        out_shape=jax.ShapeDtypeStruct((rows, d_model), out_dtype),
        grid_spec=pltpu.PrefetchScalarGridSpec(
            num_scalar_prefetch=0,
            grid=grid,
            in_specs=in_specs,
            out_specs=out_specs,
            scratch_shapes=scratch_shapes,
        ),
        compiler_params=pltpu.CompilerParams(
            dimension_semantics=dim_sem,
            vmem_limit_bytes=int(budget),
        ),
        cost_estimate=cost,
    )(x2d, w1_t, b1_2d, w2_t, b2_2d)

    return out2d.reshape(B, S, d_model)


# ---------------------------------------------------------------------------
# Reference-style init + self-test
# ---------------------------------------------------------------------------

def init_params(key, d_model, d_ffn, dtype=jnp.float32):
    """Mirror nn.Linear's uniform(-1/sqrt(fan_in), 1/sqrt(fan_in)) init."""
    k1, k2, k3, k4 = jax.random.split(key, 4)
    bound1 = 1.0 / (d_model ** 0.5)
    bound2 = 1.0 / (d_ffn ** 0.5)
    w1 = jax.random.uniform(k1, (d_ffn, d_model), dtype, -bound1, bound1)
    b1 = jax.random.uniform(k2, (d_ffn,), dtype, -bound1, bound1)
    w2 = jax.random.uniform(k3, (d_model, d_ffn), dtype, -bound2, bound2)
    b2 = jax.random.uniform(k4, (d_model,), dtype, -bound2, bound2)
    return w1, b1, w2, b2


if __name__ == "__main__":
    B, S, d_model, d_ffn = 2, 8, 32, 64

    key = jax.random.PRNGKey(0)
    kx, kp = jax.random.split(key)
    x = jax.random.normal(kx, (B, S, d_model), jnp.float32)
    w1, b1, w2, b2 = init_params(kp, d_model, d_ffn)

    # Reference (eval-mode dropout = identity) in plain JAX / f32.
    y_ref = jnp.maximum(x @ w1.T + b1, 0.0) @ w2.T + b2

    # Default path: bf16 weights/compute, f32 accumulation (loose tolerance).
    params_bf16 = prepare_ffn_params(w1, b1, w2, b2)          # bf16 by default
    out_bf16 = jax.block_until_ready(positionwise_ffn(x, *params_bf16))
    assert out_bf16.shape == (B, S, d_model)
    assert jnp.allclose(out_bf16, y_ref, atol=1e-1, rtol=5e-2)

    # f32 path for a tight numerical check.
    params_f32 = prepare_ffn_params(w1, b1, w2, b2, compute_dtype=jnp.float32)
    out_f32 = jax.block_until_ready(positionwise_ffn(x, *params_f32))
    assert out_f32.shape == (B, S, d_model)
    assert jnp.allclose(out_f32, y_ref, atol=1e-5, rtol=1e-5)

    print("KERNEL_OK")
</pallas_src>

<mosaic_0001>
module attributes {stable_mosaic.version = 11 : i64} {
  func.func @_ffn_kernel_resident(%arg0: i32, %arg1: memref<16x32xf32, #tpu.memory_space<vmem>>, %arg2: memref<32x128xbf16, #tpu.memory_space<vmem>>, %arg3: memref<1x128xf32, #tpu.memory_space<vmem>>, %arg4: memref<128x32xbf16, #tpu.memory_space<vmem>>, %arg5: memref<1x32xf32, #tpu.memory_space<vmem>>, %arg6: memref<16x32xf32, #tpu.memory_space<vmem>>) attributes {dimension_semantics = [#tpu.dimension_semantics<parallel>], iteration_bounds = array<i64: 1>, scalar_prefetch = 0 : i64, scratch_operands = 0 : i64, tpu.core_type = #tpu.core_type<tc>, window_params = [{transform_indices = @transform_0, window_bounds = array<i64: 16, 32>}, {pipeline_mode = #tpu.pipeline_mode<synchronous>, transform_indices = @transform_1, window_bounds = array<i64: 32, 128>}, {pipeline_mode = #tpu.pipeline_mode<synchronous>, transform_indices = @transform_2, window_bounds = array<i64: 1, 128>}, {pipeline_mode = #tpu.pipeline_mode<synchronous>, transform_indices = @transform_3, window_bounds = array<i64: 128, 32>}, {pipeline_mode = #tpu.pipeline_mode<synchronous>, transform_indices = @transform_4, window_bounds = array<i64: 1, 32>}, {transform_indices = @transform_5, window_bounds = array<i64: 16, 32>}]} {
    %c0 = arith.constant 0 : index
    %c0_0 = arith.constant 0 : index
    %0 = vector.load %arg1[%c0, %c0_0] : memref<16x32xf32, #tpu.memory_space<vmem>>, vector<16x32xf32>
    %1 = arith.truncf %0 : vector<16x32xf32> to vector<16x32xbf16>
    %c0_1 = arith.constant 0 : index
    %c0_2 = arith.constant 0 : index
    %2 = vector.load %arg2[%c0_1, %c0_2] : memref<32x128xbf16, #tpu.memory_space<vmem>>, vector<32x128xbf16>
    %cst = arith.constant dense<0.000000e+00> : vector<16x128xf32>
    %3 = tpu.matmul %1, %2, %cst {dimension_numbers = #tpu.dot_dimension_numbers<[1], [0], [0], [1], [0, 0, 1, 1], [], []>} : vector<16x32xbf16>, vector<32x128xbf16>, vector<16x128xf32> -> vector<16x128xf32>
    %c0_3 = arith.constant 0 : index
    %c0_4 = arith.constant 0 : index
    %4 = vector.load %arg3[%c0_3, %c0_4] : memref<1x128xf32, #tpu.memory_space<vmem>>, vector<1x128xf32>
    %5 = vector.broadcast %4 : vector<1x128xf32> to vector<16x128xf32>
    %6 = arith.addf %3, %5 : vector<16x128xf32>
    %cst_5 = arith.constant 0.000000e+00 : f32
    %7 = vector.broadcast %cst_5 : f32 to vector<16x128xf32>
    %8 = arith.maximumf %6, %7 : vector<16x128xf32>
    %9 = arith.truncf %8 : vector<16x128xf32> to vector<16x128xbf16>
    %c0_6 = arith.constant 0 : index
    %c0_7 = arith.constant 0 : index
    %10 = vector.load %arg4[%c0_6, %c0_7] : memref<128x32xbf16, #tpu.memory_space<vmem>>, vector<128x32xbf16>
    %cst_8 = arith.constant dense<0.000000e+00> : vector<16x32xf32>
    %11 = tpu.matmul %9, %10, %cst_8 {dimension_numbers = #tpu.dot_dimension_numbers<[1], [0], [0], [1], [0, 0, 1, 1], [], []>} : vector<16x128xbf16>, vector<128x32xbf16>, vector<16x32xf32> -> vector<16x32xf32>
    %c0_9 = arith.constant 0 : index
    %c0_10 = arith.constant 0 : index
    %12 = vector.load %arg5[%c0_9, %c0_10] : memref<1x32xf32, #tpu.memory_space<vmem>>, vector<1x32xf32>
    %13 = vector.broadcast %12 : vector<1x32xf32> to vector<16x32xf32>
    %14 = arith.addf %11, %13 : vector<16x32xf32>
    %c0_11 = arith.constant 0 : index
    %c0_12 = arith.constant 0 : index
    %15 = vector.load %arg6[%c0_11, %c0_12] : memref<16x32xf32, #tpu.memory_space<vmem>>, vector<16x32xf32>
    tpu.vector_store %arg6[%c0_11, %c0_12], %14 {strides = array<i32>} : memref<16x32xf32, #tpu.memory_space<vmem>>, vector<16x32xf32>,
    return
  }
  func.func @transform_0(%arg0: i32) -> (i32, i32) {
    %c0_i32 = arith.constant 0 : i32
    %c0_i32_0 = arith.constant 0 : i32
    return %arg0, %c0_i32 : i32, i32
  }
  func.func @transform_1(%arg0: i32) -> (i32, i32) {
    %c0_i32 = arith.constant 0 : i32
    %c0_i32_0 = arith.constant 0 : i32
    %c0_i32_1 = arith.constant 0 : i32
    return %c0_i32, %c0_i32_0 : i32, i32
  }
  func.func @transform_2(%arg0: i32) -> (i32, i32) {
    %c0_i32 = arith.constant 0 : i32
    %c0_i32_0 = arith.constant 0 : i32
    %c0_i32_1 = arith.constant 0 : i32
    return %c0_i32, %c0_i32_0 : i32, i32
  }
  func.func @transform_3(%arg0: i32) -> (i32, i32) {
    %c0_i32 = arith.constant 0 : i32
    %c0_i32_0 = arith.constant 0 : i32
    %c0_i32_1 = arith.constant 0 : i32
    return %c0_i32, %c0_i32_0 : i32, i32
  }
  func.func @transform_4(%arg0: i32) -> (i32, i32) {
    %c0_i32 = arith.constant 0 : i32
    %c0_i32_0 = arith.constant 0 : i32
    %c0_i32_1 = arith.constant 0 : i32
    return %c0_i32, %c0_i32_0 : i32, i32
  }
  func.func @transform_5(%arg0: i32) -> (i32, i32) {
    %c0_i32 = arith.constant 0 : i32
    %c0_i32_0 = arith.constant 0 : i32
    return %arg0, %c0_i32 : i32, i32
  }
}

</mosaic_0001>

<llo_original>
// kernel: tpu_custom_call.1
$region0: #{tpu_custom_call.1}
  #allocation0 [shape = 'u32[]', space=smem, size = 0x4, offset = 0x4, fixed_abs, tag = 'smem constant byte address 0x4 - core index']
  #allocation1 [shape = 'u32[72,128]{1,0:T(1,128)}', space=vmem, size = 0x9000, scoped, tag = 'internal scratch']
  %s0 = inlined_call_operand.vmem [shape: f32[16,32], index: 0, kind: input, shape index: {}]
  %s1 = inlined_call_operand.vmem [shape: bf16[32,128], index: 1, kind: input, shape index: {}]
  %s2 = inlined_call_operand.vmem [shape: f32[1,128], index: 2, kind: input, shape index: {}]
  %s3 = inlined_call_operand.vmem [shape: bf16[128,32], index: 3, kind: input, shape index: {}]
  %s4 = inlined_call_operand.vmem [shape: f32[1,32], index: 4, kind: input, shape index: {}]
  %s5 = inlined_call_operand.hbm [shape: f32[16,32], index: 5, kind: output, shape index: {}]
  %s6 = sld [smem:[#allocation0]]
  $region30: #{tpu_custom_call.1} parent=0
    _
  %s8 = ssub.s32 1, %s6
  %s9 = scalar_select 0, %s8, %s6
  $region1: #{tpu_custom_call.1} parent=0
    #allocation2 [shape = 'u8[8192]{0}', space=vmem, size = 0x2000, scoped, tag = 'output window, operand 0, single buffered']
    #allocation3 [shape = 's32[1]{0}', space=sflag, size = 0x4, scoped, tag = 'scoped memory for tpu_custom_call.1']
    %10 = vsyncpa [#allocation3], 0
    // Predicated region
    $region2: #{tpu_custom_call.1} parent=1 // pred_check
      _
    $region3: #{tpu_custom_call.1} parent=1 // pred_check_branch
      %12 = sbr.rel (0) target = $region5
    $region4: #{tpu_custom_call.1} parent=1 // pred_region
      _
    $region5: #{tpu_custom_call.1} parent=1 // pred_fallthru
      _
    // Predicated region
    $region6: #{tpu_custom_call.1} parent=1 // pred_check
      _
    $region7: #{tpu_custom_call.1} parent=1 // pred_check_branch
      %14 = sbr.rel (0) target = $region9
    $region8: #{tpu_custom_call.1} parent=1 // pred_region
      _
    $region9: #{tpu_custom_call.1} parent=1 // pred_fallthru
      _
    // Predicated region
    $region10: #{tpu_custom_call.1} parent=1 // pred_check
      _
    $region11: #{tpu_custom_call.1} parent=1 // pred_check_branch
      %16 = sbr.rel (0) target = $region13
    $region12: #{tpu_custom_call.1} parent=1 // pred_region
      _
    $region13: #{tpu_custom_call.1} parent=1 // pred_fallthru
      _
    // Predicated region
    $region14: #{tpu_custom_call.1} parent=1 // pred_check
      _
    $region15: #{tpu_custom_call.1} parent=1 // pred_check_branch
      %18 = sbr.rel (0) target = $region17
    $region16: #{tpu_custom_call.1} parent=1 // pred_region
      _
    $region17: #{tpu_custom_call.1} parent=1 // pred_fallthru
      _
    // Predicated region
    $region18: #{tpu_custom_call.1} parent=1 // pred_check
      _
    $region19: #{tpu_custom_call.1} parent=1 // pred_check_branch
      %20 = sbr.rel (0) target = $region21
    $region20: #{tpu_custom_call.1} parent=1 // pred_region
      _
    $region21: #{tpu_custom_call.1} parent=1 // pred_fallthru
      _
    %v22 = vld [vmem:[%s0] sm:$0xff]
    %v23 = vld [vmem:[%s0 + $0x8] sm:$0xff]
    %v24 = vpack.c.bf16 %v23, %v22
    %v25 = vld [vmem:[%s1] sm:$0xf]
    %v26 = vld [vmem:[%s1 + $0x4] sm:$0xf]
    %v27 = vld [vmem:[%s1 + $0x8] sm:$0xf]
    %v28 = vld [vmem:[%s1 + $0xc] sm:$0xf]
    %v29 = vld [vmem:[%s2] sm:$0x1]
    %v31 = vperm.slane %v29, 0
    %v37 = vunpack.c.l.b16 %v25
    %v38 = vunpack.c.l.b16 %v26
    %v39 = vunpack.c.l.b16 %v27
    %v40 = vunpack.c.l.b16 %v28
    %v41 = vpack.c.b16 %v38, %v37
    %v42 = vpack.c.b16 %v40, %v39
    %vm45 = vcmask 261120
    %v47 = vsel %vm45, %v24, 0
    %49 = vmatpush.bf16.msra.mxu0 0
    %50 = vmatpush.bf16.msra.mxu0 0
    %51 = vmatpush.bf16.msra.mxu0 0
    %52 = vmatpush.bf16.msra.mxu0 0
    %53 = vmatpush.bf16.msra.mxu0 0
    %54 = vmatpush.bf16.msra.mxu0 0
    %55 = vmatpush.bf16.msra.mxu0 %v42
    %56 = vmatpush.bf16.msra.mxu0 %v41
    %57 = vmatmul.bf16.gmra.mxu0 %v47
    %v58 = vpop.f32.mrf.mxu0
    %v59 = vadd.f32 %v31, %v58
    %v60 = vpop.f32.mrf.mxu0
    %v61 = vadd.f32 %v31, %v60
    %62 = vdwg.mxu0
    %v63 = vmax.f32 %v59, 0.0
    %v64 = vmax.f32 %v61, 0.0
    %v65 = vpack.c.bf16 %v64, %v63
    %v66 = vld [vmem:[%s3] sm:$0xf]
    %v67 = vld [vmem:[%s3 + $0x4] sm:$0xf]
    %v68 = vld [vmem:[%s3 + $0x8] sm:$0xf]
    %v69 = vld [vmem:[%s3 + $0xc] sm:$0xf]
    %v70 = vld [vmem:[%s3 + $0x10] sm:$0xf]
    %v71 = vld [vmem:[%s3 + $0x14] sm:$0xf]
    %v72 = vld [vmem:[%s3 + $0x18] sm:$0xf]
    %v73 = vld [vmem:[%s3 + $0x1c] sm:$0xf]
    %v74 = vld [vmem:[%s3 + $0x20] sm:$0xf]
    %v75 = vld [vmem:[%s3 + $0x24] sm:$0xf]
    %v76 = vld [vmem:[%s3 + $0x28] sm:$0xf]
    %v77 = vld [vmem:[%s3 + $0x2c] sm:$0xf]
    %v78 = vld [vmem:[%s3 + $0x30] sm:$0xf]
    %v79 = vld [vmem:[%s3 + $0x34] sm:$0xf]
    %v80 = vld [vmem:[%s3 + $0x38] sm:$0xf]
    %v81 = vld [vmem:[%s3 + $0x3c] sm:$0xf]
    %v82 = vld [vmem:[%s4] sm:$0x1]
    %v84 = vperm.slane %v82, 0
    %v102 = vunpack.c.l.b16 %v66
    %v103 = vunpack.c.l.b16 %v67
    %v104 = vunpack.c.l.b16 %v68
    %v105 = vunpack.c.l.b16 %v69
    %v106 = vunpack.c.l.b16 %v70
    %v107 = vunpack.c.l.b16 %v71
    %v108 = vunpack.c.l.b16 %v72
    %v109 = vunpack.c.l.b16 %v73
    %v110 = vunpack.c.l.b16 %v74
    %v111 = vunpack.c.l.b16 %v75
    %v112 = vunpack.c.l.b16 %v76
    %v113 = vunpack.c.l.b16 %v77
    %v114 = vunpack.c.l.b16 %v78
    %v115 = vunpack.c.l.b16 %v79
    %v116 = vunpack.c.l.b16 %v80
    %v117 = vunpack.c.l.b16 %v81
    %v118 = vpack.c.b16 %v103, %v102
    %v119 = vpack.c.b16 %v105, %v104
    %v120 = vpack.c.b16 %v107, %v106
    %v121 = vpack.c.b16 %v109, %v108
    %v122 = vpack.c.b16 %v111, %v110
    %v123 = vpack.c.b16 %v113, %v112
    %v124 = vpack.c.b16 %v115, %v114
    %v125 = vpack.c.b16 %v117, %v116
    %134 = vmatpush.bf16.msra.mxu0 %v125
    %135 = vmatpush.bf16.msra.mxu0 %v124
    %136 = vmatpush.bf16.msra.mxu0 %v123
    %137 = vmatpush.bf16.msra.mxu0 %v122
    %138 = vmatpush.bf16.msra.mxu0 %v121
    %139 = vmatpush.bf16.msra.mxu0 %v120
    %140 = vmatpush.bf16.msra.mxu0 %v119
    %141 = vmatpush.bf16.msra.mxu0 %v118
    %142 = vmatmul.bf16.gmra.mxu0 %v65
    %v143 = vpop.f32.mrf.mxu0
    %v144 = vadd.f32 %v84, %v143
    %v145 = vpop.f32.mrf.mxu0
    %v146 = vadd.f32 %v84, %v145
    %147 = vdwg.mxu0
    %148 = vst.msk [vmem:[#allocation2] sm:$0xff] %vm45, %v144
    %149 = vst.msk [vmem:[#allocation2 + $0x8] sm:$0xff] %vm45, %v146
    // Predicated region
    $region22: #{tpu_custom_call.1} parent=1 // pred_check
      _
    $region23: #{tpu_custom_call.1} parent=1 // pred_check_branch
      %151 = sbr.rel (0) target = $region25
    $region24: #{tpu_custom_call.1} parent=1 // pred_region
      %153 = vsyncadd [#allocation3], 0
      %s154 = sshll.u32 [#allocation2], 4
      %s155 = int_to_ptr.vmem [resolvable:$true] %s154
      %s156 = sshll.u32 %s5, 4
      %s157 = int_to_ptr.hbm [resolvable:$true] %s156
      %162 = dma.vmem_to_hbm [thread:$0]  %s155, 256, %s157, [#allocation3], 128, 128, 8
    $region25: #{tpu_custom_call.1} parent=1 // pred_fallthru
      _
    // Predicated region
    $region26: #{tpu_custom_call.1} parent=1 // pred_check
      _
    $region27: #{tpu_custom_call.1} parent=1 // pred_check_branch
      %164 = sbr.rel (0) target = $region29
    $region28: #{tpu_custom_call.1} parent=1 // pred_region
      %166 = dma.done [#allocation3], 256
    $region29: #{tpu_custom_call.1} parent=1 // pred_fallthru
      _
    %167 = vsyncpa [#allocation3], 1

</llo_original>
